<compile_context>
chip_gen: v6e
topology: v6e:2x2x1
jax: 0.10.0
libtpu: 0.0.40
codegen_flags: <defaults>
</compile_context>

<pallas_src>
import jax
import jax.numpy as jnp
from jax import lax
from jax.experimental import pallas as pl
from jax.experimental.pallas import tpu as pltpu

BN_EPS = 1e-5
GIN_EPS = 0.0  # GINConv default eps (train_eps=False)


def _gin_kernel(A_ref, P_ref, x_ref,
                w1a_ref, b1a_ref, w1b_ref, b1b_ref, s1_ref, t1_ref,
                w2a_ref, b2a_ref, w2b_ref, b2b_ref, s2_ref, t2_ref,
                wf1_ref, bf1_ref, wf2_ref, bf2_ref,
                wl_ref, bl_ref,
                out_ref):
    A = A_ref[...]          # (N, N) bf16, already contains (1+eps)*I
    x = x_ref[...]          # (N, F) bf16

    # ---- GIN layer 1: relu(nn1(A' @ x)), then folded BatchNorm ----
    h = jnp.dot(A, x, preferred_element_type=jnp.float32)                  # (N, F)
    h = jnp.dot(h.astype(jnp.bfloat16), w1a_ref[...],
                preferred_element_type=jnp.float32) + b1a_ref[...]
    h = jnp.maximum(h, 0.0)
    h = jnp.dot(h.astype(jnp.bfloat16), w1b_ref[...],
                preferred_element_type=jnp.float32) + b1b_ref[...]
    h = jnp.maximum(h, 0.0)                                                # outer relu
    h = h * s1_ref[...] + t1_ref[...]                                      # bn1 (eval, folded)

    # ---- GIN layer 2: relu(nn2(A' @ h)), then folded BatchNorm ----
    h2 = jnp.dot(A, h.astype(jnp.bfloat16), preferred_element_type=jnp.float32)
    h2 = jnp.dot(h2.astype(jnp.bfloat16), w2a_ref[...],
                 preferred_element_type=jnp.float32) + b2a_ref[...]
    h2 = jnp.maximum(h2, 0.0)
    h2 = jnp.dot(h2.astype(jnp.bfloat16), w2b_ref[...],
                 preferred_element_type=jnp.float32) + b2b_ref[...]
    h2 = jnp.maximum(h2, 0.0)
    h2 = h2 * s2_ref[...] + t2_ref[...]                                    # bn2 (eval, folded)

    # ---- fc1 + relu (dropout p=0.5, training=False -> identity) ----
    h3 = jnp.dot(h2.astype(jnp.bfloat16), wf1_ref[...],
                 preferred_element_type=jnp.float32) + bf1_ref[...]
    h3 = jnp.maximum(h3, 0.0)

    # ---- pool first (P is row-stochastic so this reorder is exact),
    #      then fc2 on the tiny (G, dim) pooled tensor ----
    pooled = jnp.dot(P_ref[...], h3.astype(jnp.bfloat16),
                     preferred_element_type=jnp.float32)                   # (G, dim)
    pooled = jnp.dot(pooled.astype(jnp.bfloat16), wf2_ref[...],
                     preferred_element_type=jnp.float32) + bf2_ref[...]
    # dropout(training=False) -> identity

    # ---- final classifier ----
    out_ref[...] = jnp.dot(pooled.astype(jnp.bfloat16), wl_ref[...],
                           preferred_element_type=jnp.float32) + bl_ref[...]


def gin_conv_net_forward(x, edge_index, batch, params, num_graphs, num_classes):
    """x: (N, F) float32; edge_index: (2, E) int32; batch: (N,) int32."""
    N = x.shape[0]
    src, dst = edge_index[0], edge_index[1]

    # Augmented adjacency: A'[dst, src] += 1 for each edge, plus (1+eps)*I
    # so that A' @ x == (1+eps)*x + sum_{(j,i) in E} x_j  (GIN "add" aggr).
    A = jnp.zeros((N, N), jnp.float32).at[dst, src].add(1.0)
    A = A + (1.0 + GIN_EPS) * jnp.eye(N, dtype=jnp.float32)

    # Row-stochastic mean-pooling matrix (each row sums to 1).
    onehot = (batch[None, :] == jnp.arange(num_graphs)[:, None]).astype(jnp.float32)
    counts = jnp.maximum(onehot.sum(axis=1, keepdims=True), 1.0)
    P = onehot / counts

    (w1a, b1a, w1b, b1b, g1, be1, m1, v1,
     w2a, b2a, w2b, b2b, g2, be2, m2, v2,
     wf1, bf1, wf2, bf2, wl, bl) = params

    # Fold eval-mode BatchNorm into scale/shift on the host.
    s1 = g1 * lax.rsqrt(v1 + BN_EPS)
    t1 = be1 - m1 * s1
    s2 = g2 * lax.rsqrt(v2 + BN_EPS)
    t2 = be2 - m2 * s2

    bf16 = lambda a: a.astype(jnp.bfloat16)  # f32 accumulation kept in kernel
    inputs = [bf16(A), bf16(P), bf16(x),
              bf16(w1a), b1a, bf16(w1b), b1b, s1, t1,
              bf16(w2a), b2a, bf16(w2b), b2b, s2, t2,
              bf16(wf1), bf1, bf16(wf2), bf2,
              bf16(wl), bl]

    out = pl.pallas_call(
        _gin_kernel,
        out_shape=jax.ShapeDtypeStruct((num_graphs, num_classes), jnp.float32),
        in_specs=[pl.BlockSpec(memory_space=pltpu.MemorySpace.VMEM)] * len(inputs),
        out_specs=pl.BlockSpec(memory_space=pltpu.MemorySpace.VMEM),
        compiler_params=pltpu.CompilerParams(vmem_limit_bytes=64 << 20),
    )(*inputs)
    return out


def init_params(key, num_features, dim, num_classes):
    """PyTorch-style init: weights/biases ~ U(-1/sqrt(fan_in), 1/sqrt(fan_in)).
    Linear weights stored as (in, out); BN params as (1, dim)."""
    ks = jax.random.split(key, 14)

    def lin(kw, kb, fan_in, fan_out):
        bound = 1.0 / jnp.sqrt(jnp.float32(fan_in))
        w = jax.random.uniform(kw, (fan_in, fan_out), jnp.float32, -bound, bound)
        b = jax.random.uniform(kb, (1, fan_out), jnp.float32, -bound, bound)
        return w, b

    # conv1 MLP
    w1a, b1a = lin(ks[0], ks[1], num_features, dim)
    w1b, b1b = lin(ks[2], ks[3], dim, dim)
    g1 = jnp.ones((1, dim), jnp.float32)
    be1 = jnp.zeros((1, dim), jnp.float32)
    m1 = jnp.zeros((1, dim), jnp.float32)
    v1 = jnp.ones((1, dim), jnp.float32)
    # conv2 MLP
    w2a, b2a = lin(ks[4], ks[5], dim, dim)
    w2b, b2b = lin(ks[6], ks[7], dim, dim)
    g2 = jnp.ones((1, dim), jnp.float32)
    be2 = jnp.zeros((1, dim), jnp.float32)
    m2 = jnp.zeros((1, dim), jnp.float32)
    v2 = jnp.ones((1, dim), jnp.float32)
    # fc1, fc2, lin
    wf1, bf1 = lin(ks[8], ks[9], dim, dim)
    wf2, bf2 = lin(ks[10], ks[11], dim, dim)
    wl, bl = lin(ks[12], ks[13], dim, num_classes)

    return [w1a, b1a, w1b, b1b, g1, be1, m1, v1,
            w2a, b2a, w2b, b2b, g2, be2, m2, v2,
            wf1, bf1, wf2, bf2, wl, bl]


if __name__ == "__main__":
    key = jax.random.PRNGKey(0)
    k_x, k_e, k_p = jax.random.split(key, 3)

    N = 64             # total nodes
    num_features = 16  # dataset[0]
    dim = 32
    num_graphs = 4
    num_classes = 8    # dataset[1]
    E = 256            # number of directed edges

    x = jax.random.normal(k_x, (N, num_features), jnp.float32)
    edge_index = jax.random.randint(k_e, (2, E), 0, N, jnp.int32)
    batch = jnp.repeat(jnp.arange(num_graphs, dtype=jnp.int32), N // num_graphs)

    params = init_params(k_p, num_features, dim, num_classes)

    out = gin_conv_net_forward(x, edge_index, batch, params,
                               num_graphs, num_classes)
    jax.block_until_ready(out)
    assert out.shape == (num_graphs, num_classes)
    assert bool(jnp.all(jnp.isfinite(out)))
    print("KERNEL_OK")
</pallas_src>

<mosaic_0001>
module attributes {stable_mosaic.version = 11 : i64} {
  func.func @_gin_kernel(%arg0: memref<64x64xbf16, #tpu.memory_space<vmem>>, %arg1: memref<4x64xbf16, #tpu.memory_space<vmem>>, %arg2: memref<64x16xbf16, #tpu.memory_space<vmem>>, %arg3: memref<16x32xbf16, #tpu.memory_space<vmem>>, %arg4: memref<1x32xf32, #tpu.memory_space<vmem>>, %arg5: memref<32x32xbf16, #tpu.memory_space<vmem>>, %arg6: memref<1x32xf32, #tpu.memory_space<vmem>>, %arg7: memref<1x32xf32, #tpu.memory_space<vmem>>, %arg8: memref<1x32xf32, #tpu.memory_space<vmem>>, %arg9: memref<32x32xbf16, #tpu.memory_space<vmem>>, %arg10: memref<1x32xf32, #tpu.memory_space<vmem>>, %arg11: memref<32x32xbf16, #tpu.memory_space<vmem>>, %arg12: memref<1x32xf32, #tpu.memory_space<vmem>>, %arg13: memref<1x32xf32, #tpu.memory_space<vmem>>, %arg14: memref<1x32xf32, #tpu.memory_space<vmem>>, %arg15: memref<32x32xbf16, #tpu.memory_space<vmem>>, %arg16: memref<1x32xf32, #tpu.memory_space<vmem>>, %arg17: memref<32x32xbf16, #tpu.memory_space<vmem>>, %arg18: memref<1x32xf32, #tpu.memory_space<vmem>>, %arg19: memref<32x8xbf16, #tpu.memory_space<vmem>>, %arg20: memref<1x8xf32, #tpu.memory_space<vmem>>, %arg21: memref<4x8xf32, #tpu.memory_space<vmem>>) attributes {dimension_semantics = [], scalar_prefetch = 0 : i64, scratch_operands = 0 : i64, tpu.core_type = #tpu.core_type<tc>} {
    %c0 = arith.constant 0 : index
    %c0_0 = arith.constant 0 : index
    %0 = vector.load %arg0[%c0, %c0_0] : memref<64x64xbf16, #tpu.memory_space<vmem>>, vector<64x64xbf16>
    %c0_1 = arith.constant 0 : index
    %c0_2 = arith.constant 0 : index
    %1 = vector.load %arg2[%c0_1, %c0_2] : memref<64x16xbf16, #tpu.memory_space<vmem>>, vector<64x16xbf16>
    %cst = arith.constant dense<0.000000e+00> : vector<64x16xf32>
    %2 = tpu.matmul %0, %1, %cst {dimension_numbers = #tpu.dot_dimension_numbers<[1], [0], [0], [1], [0, 0, 1, 1], [], []>} : vector<64x64xbf16>, vector<64x16xbf16>, vector<64x16xf32> -> vector<64x16xf32>
    %3 = arith.truncf %2 : vector<64x16xf32> to vector<64x16xbf16>
    %c0_3 = arith.constant 0 : index
    %c0_4 = arith.constant 0 : index
    %4 = vector.load %arg3[%c0_3, %c0_4] : memref<16x32xbf16, #tpu.memory_space<vmem>>, vector<16x32xbf16>
    %cst_5 = arith.constant dense<0.000000e+00> : vector<64x32xf32>
    %5 = tpu.matmul %3, %4, %cst_5 {dimension_numbers = #tpu.dot_dimension_numbers<[1], [0], [0], [1], [0, 0, 1, 1], [], []>} : vector<64x16xbf16>, vector<16x32xbf16>, vector<64x32xf32> -> vector<64x32xf32>
    %c0_6 = arith.constant 0 : index
    %c0_7 = arith.constant 0 : index
    %6 = vector.load %arg4[%c0_6, %c0_7] : memref<1x32xf32, #tpu.memory_space<vmem>>, vector<1x32xf32>
    %7 = vector.broadcast %6 : vector<1x32xf32> to vector<64x32xf32>
    %8 = arith.addf %5, %7 : vector<64x32xf32>
    %cst_8 = arith.constant 0.000000e+00 : f32
    %9 = vector.broadcast %cst_8 : f32 to vector<64x32xf32>
    %10 = arith.maximumf %8, %9 : vector<64x32xf32>
    %11 = arith.truncf %10 : vector<64x32xf32> to vector<64x32xbf16>
    %c0_9 = arith.constant 0 : index
    %c0_10 = arith.constant 0 : index
    %12 = vector.load %arg5[%c0_9, %c0_10] : memref<32x32xbf16, #tpu.memory_space<vmem>>, vector<32x32xbf16>
    %cst_11 = arith.constant dense<0.000000e+00> : vector<64x32xf32>
    %13 = tpu.matmul %11, %12, %cst_11 {dimension_numbers = #tpu.dot_dimension_numbers<[1], [0], [0], [1], [0, 0, 1, 1], [], []>} : vector<64x32xbf16>, vector<32x32xbf16>, vector<64x32xf32> -> vector<64x32xf32>
    %c0_12 = arith.constant 0 : index
    %c0_13 = arith.constant 0 : index
    %14 = vector.load %arg6[%c0_12, %c0_13] : memref<1x32xf32, #tpu.memory_space<vmem>>, vector<1x32xf32>
    %15 = vector.broadcast %14 : vector<1x32xf32> to vector<64x32xf32>
    %16 = arith.addf %13, %15 : vector<64x32xf32>
    %cst_14 = arith.constant 0.000000e+00 : f32
    %17 = vector.broadcast %cst_14 : f32 to vector<64x32xf32>
    %18 = arith.maximumf %16, %17 : vector<64x32xf32>
    %c0_15 = arith.constant 0 : index
    %c0_16 = arith.constant 0 : index
    %19 = vector.load %arg7[%c0_15, %c0_16] : memref<1x32xf32, #tpu.memory_space<vmem>>, vector<1x32xf32>
    %20 = vector.broadcast %19 : vector<1x32xf32> to vector<64x32xf32>
    %21 = arith.mulf %18, %20 : vector<64x32xf32>
    %c0_17 = arith.constant 0 : index
    %c0_18 = arith.constant 0 : index
    %22 = vector.load %arg8[%c0_17, %c0_18] : memref<1x32xf32, #tpu.memory_space<vmem>>, vector<1x32xf32>
    %23 = vector.broadcast %22 : vector<1x32xf32> to vector<64x32xf32>
    %24 = arith.addf %21, %23 : vector<64x32xf32>
    %25 = arith.truncf %24 : vector<64x32xf32> to vector<64x32xbf16>
    %cst_19 = arith.constant dense<0.000000e+00> : vector<64x32xf32>
    %26 = tpu.matmul %0, %25, %cst_19 {dimension_numbers = #tpu.dot_dimension_numbers<[1], [0], [0], [1], [0, 0, 1, 1], [], []>} : vector<64x64xbf16>, vector<64x32xbf16>, vector<64x32xf32> -> vector<64x32xf32>
    %27 = arith.truncf %26 : vector<64x32xf32> to vector<64x32xbf16>
    %c0_20 = arith.constant 0 : index
    %c0_21 = arith.constant 0 : index
    %28 = vector.load %arg9[%c0_20, %c0_21] : memref<32x32xbf16, #tpu.memory_space<vmem>>, vector<32x32xbf16>
    %cst_22 = arith.constant dense<0.000000e+00> : vector<64x32xf32>
    %29 = tpu.matmul %27, %28, %cst_22 {dimension_numbers = #tpu.dot_dimension_numbers<[1], [0], [0], [1], [0, 0, 1, 1], [], []>} : vector<64x32xbf16>, vector<32x32xbf16>, vector<64x32xf32> -> vector<64x32xf32>
    %c0_23 = arith.constant 0 : index
    %c0_24 = arith.constant 0 : index
    %30 = vector.load %arg10[%c0_23, %c0_24] : memref<1x32xf32, #tpu.memory_space<vmem>>, vector<1x32xf32>
    %31 = vector.broadcast %30 : vector<1x32xf32> to vector<64x32xf32>
    %32 = arith.addf %29, %31 : vector<64x32xf32>
    %cst_25 = arith.constant 0.000000e+00 : f32
    %33 = vector.broadcast %cst_25 : f32 to vector<64x32xf32>
    %34 = arith.maximumf %32, %33 : vector<64x32xf32>
    %35 = arith.truncf %34 : vector<64x32xf32> to vector<64x32xbf16>
    %c0_26 = arith.constant 0 : index
    %c0_27 = arith.constant 0 : index
    %36 = vector.load %arg11[%c0_26, %c0_27] : memref<32x32xbf16, #tpu.memory_space<vmem>>, vector<32x32xbf16>
    %cst_28 = arith.constant dense<0.000000e+00> : vector<64x32xf32>
    %37 = tpu.matmul %35, %36, %cst_28 {dimension_numbers = #tpu.dot_dimension_numbers<[1], [0], [0], [1], [0, 0, 1, 1], [], []>} : vector<64x32xbf16>, vector<32x32xbf16>, vector<64x32xf32> -> vector<64x32xf32>
    %c0_29 = arith.constant 0 : index
    %c0_30 = arith.constant 0 : index
    %38 = vector.load %arg12[%c0_29, %c0_30] : memref<1x32xf32, #tpu.memory_space<vmem>>, vector<1x32xf32>
    %39 = vector.broadcast %38 : vector<1x32xf32> to vector<64x32xf32>
    %40 = arith.addf %37, %39 : vector<64x32xf32>
    %cst_31 = arith.constant 0.000000e+00 : f32
    %41 = vector.broadcast %cst_31 : f32 to vector<64x32xf32>
    %42 = arith.maximumf %40, %41 : vector<64x32xf32>
    %c0_32 = arith.constant 0 : index
    %c0_33 = arith.constant 0 : index
    %43 = vector.load %arg13[%c0_32, %c0_33] : memref<1x32xf32, #tpu.memory_space<vmem>>, vector<1x32xf32>
    %44 = vector.broadcast %43 : vector<1x32xf32> to vector<64x32xf32>
    %45 = arith.mulf %42, %44 : vector<64x32xf32>
    %c0_34 = arith.constant 0 : index
    %c0_35 = arith.constant 0 : index
    %46 = vector.load %arg14[%c0_34, %c0_35] : memref<1x32xf32, #tpu.memory_space<vmem>>, vector<1x32xf32>
    %47 = vector.broadcast %46 : vector<1x32xf32> to vector<64x32xf32>
    %48 = arith.addf %45, %47 : vector<64x32xf32>
    %49 = arith.truncf %48 : vector<64x32xf32> to vector<64x32xbf16>
    %c0_36 = arith.constant 0 : index
    %c0_37 = arith.constant 0 : index
    %50 = vector.load %arg15[%c0_36, %c0_37] : memref<32x32xbf16, #tpu.memory_space<vmem>>, vector<32x32xbf16>
    %cst_38 = arith.constant dense<0.000000e+00> : vector<64x32xf32>
    %51 = tpu.matmul %49, %50, %cst_38 {dimension_numbers = #tpu.dot_dimension_numbers<[1], [0], [0], [1], [0, 0, 1, 1], [], []>} : vector<64x32xbf16>, vector<32x32xbf16>, vector<64x32xf32> -> vector<64x32xf32>
    %c0_39 = arith.constant 0 : index
    %c0_40 = arith.constant 0 : index
    %52 = vector.load %arg16[%c0_39, %c0_40] : memref<1x32xf32, #tpu.memory_space<vmem>>, vector<1x32xf32>
    %53 = vector.broadcast %52 : vector<1x32xf32> to vector<64x32xf32>
    %54 = arith.addf %51, %53 : vector<64x32xf32>
    %cst_41 = arith.constant 0.000000e+00 : f32
    %55 = vector.broadcast %cst_41 : f32 to vector<64x32xf32>
    %56 = arith.maximumf %54, %55 : vector<64x32xf32>
    %c0_42 = arith.constant 0 : index
    %c0_43 = arith.constant 0 : index
    %57 = vector.load %arg1[%c0_42, %c0_43] : memref<4x64xbf16, #tpu.memory_space<vmem>>, vector<4x64xbf16>
    %58 = arith.truncf %56 : vector<64x32xf32> to vector<64x32xbf16>
    %cst_44 = arith.constant dense<0.000000e+00> : vector<4x32xf32>
    %59 = tpu.matmul %57, %58, %cst_44 {dimension_numbers = #tpu.dot_dimension_numbers<[1], [0], [0], [1], [0, 0, 1, 1], [], []>} : vector<4x64xbf16>, vector<64x32xbf16>, vector<4x32xf32> -> vector<4x32xf32>
    %60 = arith.truncf %59 : vector<4x32xf32> to vector<4x32xbf16>
    %c0_45 = arith.constant 0 : index
    %c0_46 = arith.constant 0 : index
    %61 = vector.load %arg17[%c0_45, %c0_46] : memref<32x32xbf16, #tpu.memory_space<vmem>>, vector<32x32xbf16>
    %cst_47 = arith.constant dense<0.000000e+00> : vector<4x32xf32>
    %62 = tpu.matmul %60, %61, %cst_47 {dimension_numbers = #tpu.dot_dimension_numbers<[1], [0], [0], [1], [0, 0, 1, 1], [], []>} : vector<4x32xbf16>, vector<32x32xbf16>, vector<4x32xf32> -> vector<4x32xf32>
    %c0_48 = arith.constant 0 : index
    %c0_49 = arith.constant 0 : index
    %63 = vector.load %arg18[%c0_48, %c0_49] : memref<1x32xf32, #tpu.memory_space<vmem>>, vector<1x32xf32>
    %64 = vector.broadcast %63 : vector<1x32xf32> to vector<4x32xf32>
    %65 = arith.addf %62, %64 : vector<4x32xf32>
    %66 = arith.truncf %65 : vector<4x32xf32> to vector<4x32xbf16>
    %c0_50 = arith.constant 0 : index
    %c0_51 = arith.constant 0 : index
    %67 = vector.load %arg19[%c0_50, %c0_51] : memref<32x8xbf16, #tpu.memory_space<vmem>>, vector<32x8xbf16>
    %cst_52 = arith.constant dense<0.000000e+00> : vector<4x8xf32>
    %68 = tpu.matmul %66, %67, %cst_52 {dimension_numbers = #tpu.dot_dimension_numbers<[1], [0], [0], [1], [0, 0, 1, 1], [], []>} : vector<4x32xbf16>, vector<32x8xbf16>, vector<4x8xf32> -> vector<4x8xf32>
    %c0_53 = arith.constant 0 : index
    %c0_54 = arith.constant 0 : index
    %69 = vector.load %arg20[%c0_53, %c0_54] : memref<1x8xf32, #tpu.memory_space<vmem>>, vector<1x8xf32>
    %70 = vector.broadcast %69 : vector<1x8xf32> to vector<4x8xf32>
    %71 = arith.addf %68, %70 : vector<4x8xf32>
    %c0_55 = arith.constant 0 : index
    %c0_56 = arith.constant 0 : index
    %72 = vector.load %arg21[%c0_55, %c0_56] : memref<4x8xf32, #tpu.memory_space<vmem>>, vector<4x8xf32>
    tpu.vector_store %arg21[%c0_55, %c0_56], %71 {strides = array<i32>} : memref<4x8xf32, #tpu.memory_space<vmem>>, vector<4x8xf32>,
    return
  }
}

</mosaic_0001>

<llo_original>
// kernel: tpu_custom_call.1
$region0: #{tpu_custom_call.1}
  #allocation0 [shape = 'u32[]', space=smem, size = 0x4, offset = 0x4, fixed_abs, tag = 'smem constant byte address 0x4 - core index']
  #allocation1 [shape = 'u32[144,128]{1,0:T(1,128)}', space=vmem, size = 0x12000, scoped, tag = 'internal scratch']
  %s0 = inlined_call_operand.vmem [shape: bf16[64,64], index: 0, kind: input, shape index: {}]
  %s1 = inlined_call_operand.hbm [shape: bf16[4,64], index: 1, kind: input, shape index: {}]
  %s2 = inlined_call_operand.vmem [shape: bf16[64,16], index: 2, kind: input, shape index: {}]
  %s3 = inlined_call_operand.hbm [shape: bf16[16,32], index: 3, kind: input, shape index: {}]
  %s4 = inlined_call_operand.hbm [shape: f32[1,32], index: 4, kind: input, shape index: {}]
  %s5 = inlined_call_operand.vmem [shape: bf16[32,32], index: 5, kind: input, shape index: {}]
  %s6 = inlined_call_operand.hbm [shape: f32[1,32], index: 6, kind: input, shape index: {}]
  %s7 = inlined_call_operand.hbm [shape: f32[1,32], index: 7, kind: input, shape index: {}]
  %s8 = inlined_call_operand.hbm [shape: f32[1,32], index: 8, kind: input, shape index: {}]
  %s9 = inlined_call_operand.vmem [shape: bf16[32,32], index: 9, kind: input, shape index: {}]
  %s10 = inlined_call_operand.hbm [shape: f32[1,32], index: 10, kind: input, shape index: {}]
  %s11 = inlined_call_operand.vmem [shape: bf16[32,32], index: 11, kind: input, shape index: {}]
  %s12 = inlined_call_operand.vmem [shape: f32[1,32], index: 12, kind: input, shape index: {}]
  %s13 = inlined_call_operand.hbm [shape: f32[1,32], index: 13, kind: input, shape index: {}]
  %s14 = inlined_call_operand.hbm [shape: f32[1,32], index: 14, kind: input, shape index: {}]
  %s15 = inlined_call_operand.hbm [shape: bf16[32,32], index: 15, kind: input, shape index: {}]
  %s16 = inlined_call_operand.vmem [shape: f32[1,32], index: 16, kind: input, shape index: {}]
  %s17 = inlined_call_operand.hbm [shape: bf16[32,32], index: 17, kind: input, shape index: {}]
  %s18 = inlined_call_operand.vmem [shape: f32[1,32], index: 18, kind: input, shape index: {}]
  %s19 = inlined_call_operand.vmem [shape: bf16[32,8], index: 19, kind: input, shape index: {}]
  %s20 = inlined_call_operand.vmem [shape: f32[1,8], index: 20, kind: input, shape index: {}]
  %s21 = inlined_call_operand.hbm [shape: f32[4,8], index: 21, kind: output, shape index: {}]
  %s22 = sld [smem:[#allocation0]]
  $region138: #{tpu_custom_call.1} parent=0
    _
  %s24 = ssub.s32 1, %s22
  %s25 = scalar_select 0, %s24, %s22
  $region1: #{tpu_custom_call.1} parent=0
    #allocation2 [shape = 'u8[1024]{0}', space=vmem, size = 0x400, scoped, tag = 'input window, operand 1, single buffered']
    #allocation3 [shape = 's32[1]{0}', space=sflag, size = 0x4, scoped, tag = 'scoped memory for tpu_custom_call.1']
    #allocation4 [shape = 's32[1]{0}', space=sflag, size = 0x4, scoped, tag = 'scoped memory for tpu_custom_call.1']
    #allocation5 [shape = 'u8[4096]{0}', space=vmem, size = 0x1000, scoped, tag = 'input window, operand 3, single buffered']
    #allocation6 [shape = 's32[1]{0}', space=sflag, size = 0x4, scoped, tag = 'scoped memory for tpu_custom_call.1']
    #allocation7 [shape = 'u8[512]{0}', space=vmem, size = 0x400, scoped, tag = 'input window, operand 4, single buffered']
    #allocation8 [shape = 'u8[512]{0}', space=vmem, size = 0x400, scoped, tag = 'input window, operand 6, single buffered']
    #allocation9 [shape = 's32[1]{0}', space=sflag, size = 0x4, scoped, tag = 'scoped memory for tpu_custom_call.1']
    #allocation10 [shape = 'u8[512]{0}', space=vmem, size = 0x400, scoped, tag = 'input window, operand 7, single buffered']
    #allocation11 [shape = 'u8[512]{0}', space=vmem, size = 0x400, scoped, tag = 'input window, operand 8, single buffered']
    #allocation12 [shape = 's32[1]{0}', space=sflag, size = 0x4, scoped, tag = 'scoped memory for tpu_custom_call.1']
    #allocation13 [shape = 'u8[512]{0}', space=vmem, size = 0x400, scoped, tag = 'input window, operand 10, single buffered']
    #allocation14 [shape = 'u8[512]{0}', space=vmem, size = 0x400, scoped, tag = 'input window, operand 13, single buffered']
    #allocation15 [shape = 's32[1]{0}', space=sflag, size = 0x4, scoped, tag = 'scoped memory for tpu_custom_call.1']
    #allocation16 [shape = 'u8[512]{0}', space=vmem, size = 0x400, scoped, tag = 'input window, operand 14, single buffered']
    #allocation17 [shape = 'u8[8192]{0}', space=vmem, size = 0x2000, scoped, tag = 'input window, operand 15, single buffered']
    #allocation18 [shape = 's32[1]{0}', space=sflag, size = 0x4, scoped, tag = 'scoped memory for tpu_custom_call.1']
    #allocation19 [shape = 'u8[8192]{0}', space=vmem, size = 0x2000, scoped, tag = 'input window, operand 17, single buffered']
    #allocation20 [shape = 'u8[2048]{0}', space=vmem, size = 0x800, scoped, tag = 'output window, operand 0, single buffered']
    %26 = vsyncpa [#allocation3], 0
    %27 = vsyncpa [#allocation6], 0
    %28 = vsyncpa [#allocation9], 0
    %29 = vsyncpa [#allocation12], 0
    %30 = vsyncpa [#allocation15], 0
    %31 = vsyncpa [#allocation18], 0
    %32 = vsyncpa [#allocation4], 0
    // Predicated region
    $region2: #{tpu_custom_call.1} parent=1 // pred_check
      _
    $region3: #{tpu_custom_call.1} parent=1 // pred_check_branch
      %34 = sbr.rel (0) target = $region5
    $region4: #{tpu_custom_call.1} parent=1 // pred_region
      _
    $region5: #{tpu_custom_call.1} parent=1 // pred_fallthru
      _
    // Predicated region
    $region6: #{tpu_custom_call.1} parent=1 // pred_check
      _
    $region7: #{tpu_custom_call.1} parent=1 // pred_check_branch
      %36 = sbr.rel (0) target = $region9
    $region8: #{tpu_custom_call.1} parent=1 // pred_region
      %s38 = ssub.s32 32, 32
      %39 = vsyncadd [#allocation3], %s38
      %s41 = sshll.u32 [#allocation2], 4
      %s42 = int_to_ptr.vmem [resolvable:$true] %s41
      %44 = dma.hbm_to_vmem [thread:$0]  %s1, 32, %s42, [#allocation3]
    $region9: #{tpu_custom_call.1} parent=1 // pred_fallthru
      _
    // Predicated region
    $region10: #{tpu_custom_call.1} parent=1 // pred_check
      _
    $region11: #{tpu_custom_call.1} parent=1 // pred_check_branch
      %46 = sbr.rel (0) target = $region13
    $region12: #{tpu_custom_call.1} parent=1 // pred_region
      _
    $region13: #{tpu_custom_call.1} parent=1 // pred_fallthru
      _
    // Predicated region
    $region14: #{tpu_custom_call.1} parent=1 // pred_check
      _
    $region15: #{tpu_custom_call.1} parent=1 // pred_check_branch
      %48 = sbr.rel (0) target = $region17
    $region16: #{tpu_custom_call.1} parent=1 // pred_region
      %s50 = ssub.s32 128, 128
      %51 = vsyncadd [#allocation6], %s50
      %s52 = sshll.u32 [#allocation5], 4
      %s53 = int_to_ptr.vmem [resolvable:$true] %s52
      %58 = dma.hbm_to_vmem [thread:$0]  %s3, 128, %s53, [#allocation6], 64, 64, 4
    $region17: #{tpu_custom_call.1} parent=1 // pred_fallthru
      _
    // Predicated region
    $region18: #{tpu_custom_call.1} parent=1 // pred_check
      _
    $region19: #{tpu_custom_call.1} parent=1 // pred_check_branch
      %60 = sbr.rel (0) target = $region21
    $region20: #{tpu_custom_call.1} parent=1 // pred_region
      %s62 = ssub.s32 16, 16
      %63 = vsyncadd [#allocation6], %s62
      %s65 = sshll.u32 [#allocation7], 4
      %s66 = int_to_ptr.vmem [resolvable:$true] %s65
      %68 = dma.hbm_to_vmem [thread:$0]  %s4, 16, %s66, [#allocation6]
    $region21: #{tpu_custom_call.1} parent=1 // pred_fallthru
      _
    // Predicated region
    $region22: #{tpu_custom_call.1} parent=1 // pred_check
      _
    $region23: #{tpu_custom_call.1} parent=1 // pred_check_branch
      %70 = sbr.rel (0) target = $region25
    $region24: #{tpu_custom_call.1} parent=1 // pred_region
      _
    $region25: #{tpu_custom_call.1} parent=1 // pred_fallthru
      _
    // Predicated region
    $region26: #{tpu_custom_call.1} parent=1 // pred_check
      _
    $region27: #{tpu_custom_call.1} parent=1 // pred_check_branch
      %72 = sbr.rel (0) target = $region29
    $region28: #{tpu_custom_call.1} parent=1 // pred_region
      %s74 = ssub.s32 16, 16
      %75 = vsyncadd [#allocation9], %s74
      %s77 = sshll.u32 [#allocation8], 4
      %s78 = int_to_ptr.vmem [resolvable:$true] %s77
      %80 = dma.hbm_to_vmem [thread:$0]  %s6, 16, %s78, [#allocation9]
    $region29: #{tpu_custom_call.1} parent=1 // pred_fallthru
      _
    // Predicated region
    $region30: #{tpu_custom_call.1} parent=1 // pred_check
      _
    $region31: #{tpu_custom_call.1} parent=1 // pred_check_branch
      %82 = sbr.rel (0) target = $region33
    $region32: #{tpu_custom_call.1} parent=1 // pred_region
      %s84 = ssub.s32 16, 16
      %85 = vsyncadd [#allocation9], %s84
      %s87 = sshll.u32 [#allocation10], 4
      %s88 = int_to_ptr.vmem [resolvable:$true] %s87
      %90 = dma.hbm_to_vmem [thread:$0]  %s7, 16, %s88, [#allocation9]
    $region33: #{tpu_custom_call.1} parent=1 // pred_fallthru
      _
    // Predicated region
    $region34: #{tpu_custom_call.1} parent=1 // pred_check
      _
    $region35: #{tpu_custom_call.1} parent=1 // pred_check_branch
      %92 = sbr.rel (0) target = $region37
    $region36: #{tpu_custom_call.1} parent=1 // pred_region
      %s94 = ssub.s32 16, 16
      %95 = vsyncadd [#allocation12], %s94
      %s97 = sshll.u32 [#allocation11], 4
      %s98 = int_to_ptr.vmem [resolvable:$true] %s97
      %100 = dma.hbm_to_vmem [thread:$0]  %s8, 16, %s98, [#allocation12]
    $region37: #{tpu_custom_call.1} parent=1 // pred_fallthru
      _
    // Predicated region
    $region38: #{tpu_custom_call.1} parent=1 // pred_check
      _
    $region39: #{tpu_custom_call.1} parent=1 // pred_check_branch
      %102 = sbr.rel (0) target = $region41
    $region40: #{tpu_custom_call.1} parent=1 // pred_region
      _
    $region41: #{tpu_custom_call.1} parent=1 // pred_fallthru
      _
    // Predicated region
    $region42: #{tpu_custom_call.1} parent=1 // pred_check
      _
    $region43: #{tpu_custom_call.1} parent=1 // pred_check_branch
      %104 = sbr.rel (0) target = $region45
    $region44: #{tpu_custom_call.1} parent=1 // pred_region
      %s106 = ssub.s32 16, 16
      %107 = vsyncadd [#allocation12], %s106
      %s109 = sshll.u32 [#allocation13], 4
      %s110 = int_to_ptr.vmem [resolvable:$true] %s109
      %112 = dma.hbm_to_vmem [thread:$0]  %s10, 16, %s110, [#allocation12]
    $region45: #{tpu_custom_call.1} parent=1 // pred_fallthru
      _
    // Predicated region
    $region46: #{tpu_custom_call.1} parent=1 // pred_check
      _
    $region47: #{tpu_custom_call.1} parent=1 // pred_check_branch
      %114 = sbr.rel (0) target = $region49
    $region48: #{tpu_custom_call.1} parent=1 // pred_region
      _
    $region49: #{tpu_custom_call.1} parent=1 // pred_fallthru
      _
    // Predicated region
    $region50: #{tpu_custom_call.1} parent=1 // pred_check
      _
    $region51: #{tpu_custom_call.1} parent=1 // pred_check_branch
      %116 = sbr.rel (0) target = $region53
    $region52: #{tpu_custom_call.1} parent=1 // pred_region
      _
    $region53: #{tpu_custom_call.1} parent=1 // pred_fallthru
      _
    // Predicated region
    $region54: #{tpu_custom_call.1} parent=1 // pred_check
      _
    $region55: #{tpu_custom_call.1} parent=1 // pred_check_branch
      %118 = sbr.rel (0) target = $region57
    $region56: #{tpu_custom_call.1} parent=1 // pred_region
      %s120 = ssub.s32 16, 16
      %121 = vsyncadd [#allocation15], %s120
      %s123 = sshll.u32 [#allocation14], 4
      %s124 = int_to_ptr.vmem [resolvable:$true] %s123
      %126 = dma.hbm_to_vmem [thread:$0]  %s13, 16, %s124, [#allocation15]
    $region57: #{tpu_custom_call.1} parent=1 // pred_fallthru
      _
    // Predicated region
    $region58: #{tpu_custom_call.1} parent=1 // pred_check
      _
    $region59: #{tpu_custom_call.1} parent=1 // pred_check_branch
      %128 = sbr.rel (0) target = $region61
    $region60: #{tpu_custom_call.1} parent=1 // pred_region
      %s130 = ssub.s32 16, 16
      %131 = vsyncadd [#allocation15], %s130
      %s133 = sshll.u32 [#allocation16], 4
      %s134 = int_to_ptr.vmem [resolvable:$true] %s133
      %136 = dma.hbm_to_vmem [thread:$0]  %s14, 16, %s134, [#allocation15]
    $region61: #{tpu_custom_call.1} parent=1 // pred_fallthru
      _
    // Predicated region
    $region62: #{tpu_custom_call.1} parent=1 // pred_check
      _
    $region63: #{tpu_custom_call.1} parent=1 // pred_check_branch
      %138 = sbr.rel (0) target = $region65
    $region64: #{tpu_custom_call.1} parent=1 // pred_region
      %s140 = ssub.s32 256, 256
      %141 = vsyncadd [#allocation18], %s140
      %s142 = sshll.u32 [#allocation17], 4
      %s143 = int_to_ptr.vmem [resolvable:$true] %s142
      %148 = dma.hbm_to_vmem [thread:$0]  %s15, 256, %s143, [#allocation18], 64, 64, 4
    $region65: #{tpu_custom_call.1} parent=1 // pred_fallthru
      _
    // Predicated region
    $region66: #{tpu_custom_call.1} parent=1 // pred_check
      _
    $region67: #{tpu_custom_call.1} parent=1 // pred_check_branch
      %150 = sbr.rel (0) target = $region69
    $region68: #{tpu_custom_call.1} parent=1 // pred_region
      _
    $region69: #{tpu_custom_call.1} parent=1 // pred_fallthru
      _
    // Predicated region
    $region70: #{tpu_custom_call.1} parent=1 // pred_check
      _
    $region71: #{tpu_custom_call.1} parent=1 // pred_check_branch
      %152 = sbr.rel (0) target = $region73
    $region72: #{tpu_custom_call.1} parent=1 // pred_region
      %s154 = ssub.s32 256, 256
      %155 = vsyncadd [#allocation18], %s154
      %s156 = sshll.u32 [#allocation19], 4
      %s157 = int_to_ptr.vmem [resolvable:$true] %s156
      %162 = dma.hbm_to_vmem [thread:$0]  %s17, 256, %s157, [#allocation18], 64, 64, 4
    $region73: #{tpu_custom_call.1} parent=1 // pred_fallthru
      _
    // Predicated region
    $region74: #{tpu_custom_call.1} parent=1 // pred_check
      _
    $region75: #{tpu_custom_call.1} parent=1 // pred_check_branch
      %164 = sbr.rel (0) target = $region77
    $region76: #{tpu_custom_call.1} parent=1 // pred_region
      _
    $region77: #{tpu_custom_call.1} parent=1 // pred_fallthru
      _
    // Predicated region
    $region78: #{tpu_custom_call.1} parent=1 // pred_check
      _
    $region79: #{tpu_custom_call.1} parent=1 // pred_check_branch
      %166 = sbr.rel (0) target = $region81
    $region80: #{tpu_custom_call.1} parent=1 // pred_region
      _
    $region81: #{tpu_custom_call.1} parent=1 // pred_fallthru
      _
    // Predicated region
    $region82: #{tpu_custom_call.1} parent=1 // pred_check
      _
    $region83: #{tpu_custom_call.1} parent=1 // pred_check_branch
      %168 = sbr.rel (0) target = $region85
    $region84: #{tpu_custom_call.1} parent=1 // pred_region
      _
    $region85: #{tpu_custom_call.1} parent=1 // pred_fallthru
      _
    // Predicated region
    $region86: #{tpu_custom_call.1} parent=1 // pred_check
      _
    $region87: #{tpu_custom_call.1} parent=1 // pred_check_branch
      %170 = sbr.rel (0) target = $region89
    $region88: #{tpu_custom_call.1} parent=1 // pred_region
      %171 = dma.done [#allocation3], 32
    $region89: #{tpu_custom_call.1} parent=1 // pred_fallthru
      _
    // Predicated region
    $region90: #{tpu_custom_call.1} parent=1 // pred_check
      _
    $region91: #{tpu_custom_call.1} parent=1 // pred_check_branch
      %173 = sbr.rel (0) target = $region93
    $region92: #{tpu_custom_call.1} parent=1 // pred_region
      %174 = dma.done [#allocation6], 128
    $region93: #{tpu_custom_call.1} parent=1 // pred_fallthru
      _
    // Predicated region
    $region94: #{tpu_custom_call.1} parent=1 // pred_check
      _
    $region95: #{tpu_custom_call.1} parent=1 // pred_check_branch
      %176 = sbr.rel (0) target = $region97
    $region96: #{tpu_custom_call.1} parent=1 // pred_region
      %177 = dma.done [#allocation6], 16
    $region97: #{tpu_custom_call.1} parent=1 // pred_fallthru
      _
    // Predicated region
    $region98: #{tpu_custom_call.1} parent=1 // pred_check
      _
    $region99: #{tpu_custom_call.1} parent=1 // pred_check_branch
      %179 = sbr.rel (0) target = $region101
    $region100: #{tpu_custom_call.1} parent=1 // pred_region
      %180 = dma.done [#allocation9], 16
    $region101: #{tpu_custom_call.1} parent=1 // pred_fallthru
      _
    // Predicated region
    $region102: #{tpu_custom_call.1} parent=1 // pred_check
      _
    $region103: #{tpu_custom_call.1} parent=1 // pred_check_branch
      %182 = sbr.rel (0) target = $region105
    $region104: #{tpu_custom_call.1} parent=1 // pred_region
      %183 = dma.done [#allocation9], 16
    $region105: #{tpu_custom_call.1} parent=1 // pred_fallthru
      _
    // Predicated region
    $region106: #{tpu_custom_call.1} parent=1 // pred_check
      _
    $region107: #{tpu_custom_call.1} parent=1 // pred_check_branch
      %185 = sbr.rel (0) target = $region109
    $region108: #{tpu_custom_call.1} parent=1 // pred_region
      %186 = dma.done [#allocation12], 16
    $region109: #{tpu_custom_call.1} parent=1 // pred_fallthru
      _
    // Predicated region
    $region110: #{tpu_custom_call.1} parent=1 // pred_check
      _
    $region111: #{tpu_custom_call.1} parent=1 // pred_check_branch
      %188 = sbr.rel (0) target = $region113
    $region112: #{tpu_custom_call.1} parent=1 // pred_region
      %189 = dma.done [#allocation12], 16
    $region113: #{tpu_custom_call.1} parent=1 // pred_fallthru
      _
    // Predicated region
    $region114: #{tpu_custom_call.1} parent=1 // pred_check
      _
    $region115: #{tpu_custom_call.1} parent=1 // pred_check_branch
      %191 = sbr.rel (0) target = $region117
    $region116: #{tpu_custom_call.1} parent=1 // pred_region
      %192 = dma.done [#allocation15], 16
    $region117: #{tpu_custom_call.1} parent=1 // pred_fallthru
      _
    // Predicated region
    $region118: #{tpu_custom_call.1} parent=1 // pred_check
      _
    $region119: #{tpu_custom_call.1} parent=1 // pred_check_branch
      %194 = sbr.rel (0) target = $region121
    $region120: #{tpu_custom_call.1} parent=1 // pred_region
      %195 = dma.done [#allocation15], 16
    $region121: #{tpu_custom_call.1} parent=1 // pred_fallthru
      _
    // Predicated region
    $region122: #{tpu_custom_call.1} parent=1 // pred_check
      _
    $region123: #{tpu_custom_call.1} parent=1 // pred_check_branch
      %197 = sbr.rel (0) target = $region125
    $region124: #{tpu_custom_call.1} parent=1 // pred_region
      %198 = dma.done [#allocation18], 256
    $region125: #{tpu_custom_call.1} parent=1 // pred_fallthru
      _
    // Predicated region
    $region126: #{tpu_custom_call.1} parent=1 // pred_check
      _
    $region127: #{tpu_custom_call.1} parent=1 // pred_check_branch
      %200 = sbr.rel (0) target = $region129
    $region128: #{tpu_custom_call.1} parent=1 // pred_region
      %201 = dma.done [#allocation18], 256
    $region129: #{tpu_custom_call.1} parent=1 // pred_fallthru
      _
    %v203 = vld [vmem:[%s0] sm:$0xf]
    %v204 = vld [vmem:[%s0 + $0x4] sm:$0xf]
    %v205 = vld [vmem:[%s0 + $0x8] sm:$0xf]
    %v206 = vld [vmem:[%s0 + $0xc] sm:$0xf]
    %v207 = vld [vmem:[%s0 + $0x10] sm:$0xf]
    %v208 = vld [vmem:[%s0 + $0x14] sm:$0xf]
    %v209 = vld [vmem:[%s0 + $0x18] sm:$0xf]
    %v210 = vld [vmem:[%s0 + $0x1c] sm:$0xf]
    %v211 = vld [vmem:[%s2] sm:$0xf]
    %v212 = vld [vmem:[%s2 + $0x4] sm:$0xf]
    %v213 = vld [vmem:[%s2 + $0x8] sm:$0xf]
    %v214 = vld [vmem:[%s2 + $0xc] sm:$0xf]
    %v215 = vld [vmem:[%s2 + $0x10] sm:$0xf]
    %v216 = vld [vmem:[%s2 + $0x14] sm:$0xf]
    %v217 = vld [vmem:[%s2 + $0x18] sm:$0xf]
    %v218 = vld [vmem:[%s2 + $0x1c] sm:$0xf]
    %v227 = vunpack.c.l.b16 %v203
    %v228 = vunpack.c.l.b16 %v204
    %v229 = vunpack.c.l.b16 %v205
    %v230 = vunpack.c.l.b16 %v206
    %v231 = vunpack.c.l.b16 %v207
    %v232 = vunpack.c.l.b16 %v208
    %v233 = vunpack.c.l.b16 %v209
    %v234 = vunpack.c.l.b16 %v210
    %v235 = vpack.c.b16 %v228, %v227
    %v236 = vpack.c.b16 %v230, %v229
    %v237 = vpack.c.b16 %v232, %v231
    %v238 = vpack.c.b16 %v234, %v233
    %v247 = vunpack.c.l.b16 %v211
    %v248 = vunpack.c.l.b16 %v212
    %v249 = vunpack.c.l.b16 %v213
    %v250 = vunpack.c.l.b16 %v214
    %v251 = vunpack.c.l.b16 %v215
    %v252 = vunpack.c.l.b16 %v216
    %v253 = vunpack.c.l.b16 %v217
    %v254 = vunpack.c.l.b16 %v218
    %v255 = vpack.c.b16 %v248, %v247
    %v256 = vpack.c.b16 %v250, %v249
    %v257 = vpack.c.b16 %v252, %v251
    %v258 = vpack.c.b16 %v254, %v253
    %vm263 = vcmask 523264
    %v265 = vsel %vm263, %v235, 0
    %v268 = vsel %vm263, %v236, 0
    %v271 = vsel %vm263, %v237, 0
    %v274 = vsel %vm263, %v238, 0
    %276 = vmatprep.subr.bf16.mxu0 0
    %277 = vmatpush1.bf16.msra.mxu0 0
    %278 = vmatprep.subr.bf16.mxu0 0
    %279 = vmatpush1.bf16.msra.mxu0 0
    %280 = vmatprep.subr.bf16.mxu0 0
    %281 = vmatpush1.bf16.msra.mxu0 0
    %282 = vmatprep.subr.bf16.mxu0 0
    %283 = vmatpush1.bf16.msra.mxu0 0
    %284 = vmatprep.subr.bf16.mxu0 0
    %285 = vmatpush1.bf16.msra.mxu0 %v258
    %286 = vmatprep.subr.bf16.mxu0 0
    %287 = vmatpush1.bf16.msra.mxu0 %v257
    %288 = vmatprep.subr.bf16.mxu0 0
    %289 = vmatpush1.bf16.msra.mxu0 %v256
    %290 = vmatprep.subr.bf16.mxu0 0
    %291 = vmatpush1.bf16.msra.mxu0 %v255
    %292 = vmatprep.subr.bf16.mxu0 0
    %293 = vmatpush2.bf16.msra.mxu0 0
    %294 = vmatprep.subr.bf16.mxu0 0
    %295 = vmatpush2.bf16.msra.mxu0 0
    %296 = vmatprep.subr.bf16.mxu0 0
    %297 = vmatpush2.bf16.msra.mxu0 0
    %298 = vmatprep.subr.bf16.mxu0 0
    %299 = vmatpush2.bf16.msra.mxu0 0
    %300 = vmatprep.subr.bf16.mxu0 0
    %301 = vmatpush2.bf16.msra.mxu0 0
    %302 = vmatprep.subr.bf16.mxu0 0
    %303 = vmatpush2.bf16.msra.mxu0 0
    %304 = vmatprep.subr.bf16.mxu0 0
    %305 = vmatpush2.bf16.msra.mxu0 0
    %306 = vmatprep.subr.bf16.mxu0 0
    %307 = vmatpush2.bf16.msra.mxu0 0
    %308 = vmatprep.mubr.bf16.mxu0 0
    %309 = vmatmul.mubr.bf16.gmra.mxu0 %v265
    %v310 = vpop.f32.mrf.mxu0
    %v311 = vadd.f32 0.0, %v310
    %v312 = vpop.f32.mrf.mxu0
    %v313 = vpop.f32.mrf.mxu0
    %v314 = vadd.f32 0.0, %v313
    %v315 = vpop.f32.mrf.mxu0
    %316 = vmatprep.mubr.bf16.mxu0 0
    %317 = vmatmul.mubr.bf16.gmra.mxu0 %v268
    %v318 = vpop.f32.mrf.mxu0
    %v319 = vadd.f32 0.0, %v318
    %v320 = vpop.f32.mrf.mxu0
    %v321 = vpop.f32.mrf.mxu0
    %v322 = vadd.f32 0.0, %v321
    %v323 = vpop.f32.mrf.mxu0
    %324 = vmatprep.mubr.bf16.mxu0 0
    %325 = vmatmul.mubr.bf16.gmra.mxu0 %v271
    %v326 = vpop.f32.mrf.mxu0
    %v327 = vadd.f32 0.0, %v326
    %v328 = vpop.f32.mrf.mxu0
    %v329 = vpop.f32.mrf.mxu0
    %v330 = vadd.f32 0.0, %v329
    %v331 = vpop.f32.mrf.mxu0
    %332 = vmatprep.mubr.bf16.mxu0 0
    %333 = vmatmul.mubr.bf16.gmra.mxu0 %v274
    %v334 = vpop.f32.mrf.mxu0
    %v335 = vadd.f32 0.0, %v334
    %v336 = vpop.f32.mrf.mxu0
    %v337 = vpop.f32.mrf.mxu0
    %v338 = vadd.f32 0.0, %v337
    %v339 = vpop.f32.mrf.mxu0
    %340 = vdwg.mxu0
    %v341 = vpack.c.bf16 %v314, %v311
    %v342 = vpack.c.bf16 %v322, %v319
    %v343 = vpack.c.bf16 %v330, %v327
    %v344 = vpack.c.bf16 %v338, %v335
    %v345 = vld [vmem:[#allocation5] sm:$0xf]
    %v346 = vld [vmem:[#allocation5 + $0x4] sm:$0xf]
    %v347 = vld [vmem:[#allocation7] sm:$0x1]
    %v349 = vlaneseq
    %v350 = vshrl.u32 %v349, 7
    %v351 = vsub.s32 0, %v350
    %v352 = vrot.slane %v347, %v351
    %v356 = vunpack.c.l.b16 %v345
    %v357 = vunpack.c.l.b16 %v346
    %v358 = vpack.c.b16 %v357, %v356
    %vm360 = vcmask 130048
    %v362 = vsel %vm360, %v341, 0
    %v365 = vsel %vm360, %v342, 0
    %v368 = vsel %vm360, %v343, 0
    %v371 = vsel %vm360, %v344, 0
    %373 = vmatprep.subr.bf16.mxu0 0
    %374 = vmatpush1.bf16.msra.mxu0 0
    %375 = vmatprep.subr.bf16.mxu0 0
    %376 = vmatpush1.bf16.msra.mxu0 0
    %377 = vmatprep.subr.bf16.mxu0 0
    %378 = vmatpush1.bf16.msra.mxu0 0
    %379 = vmatprep.subr.bf16.mxu0 0
    %380 = vmatpush1.bf16.msra.mxu0 0
    %381 = vmatprep.subr.bf16.mxu0 0
    %382 = vmatpush1.bf16.msra.mxu0 0
    %383 = vmatprep.subr.bf16.mxu0 0
    %384 = vmatpush1.bf16.msra.mxu0 0
    %385 = vmatprep.subr.bf16.mxu0 0
    %386 = vmatpush1.bf16.msra.mxu0 0
    %387 = vmatprep.subr.bf16.mxu0 0
    %388 = vmatpush1.bf16.msra.mxu0 %v358
    %389 = vmatprep.subr.bf16.mxu0 0
    %390 = vmatpush2.bf16.msra.mxu0 0
    %391 = vmatprep.subr.bf16.mxu0 0
    %392 = vmatpush2.bf16.msra.mxu0 0
    %393 = vmatprep.subr.bf16.mxu0 0
    %394 = vmatpush2.bf16.msra.mxu0 0
    %395 = vmatprep.subr.bf16.mxu0 0
    %396 = vmatpush2.bf16.msra.mxu0 0
    %397 = vmatprep.subr.bf16.mxu0 0
    %398 = vmatpush2.bf16.msra.mxu0 0
    %399 = vmatprep.subr.bf16.mxu0 0
    %400 = vmatpush2.bf16.msra.mxu0 0
    %401 = vmatprep.subr.bf16.mxu0 0
    %402 = vmatpush2.bf16.msra.mxu0 0
    %403 = vmatprep.subr.bf16.mxu0 0
    %404 = vmatpush2.bf16.msra.mxu0 0
    %405 = vmatprep.mubr.bf16.mxu0 0
    %406 = vmatmul.mubr.bf16.gmra.mxu0 %v362
    %v407 = vpop.f32.mrf.mxu0
    %v408 = vadd.f32 %v352, %v407
    %v409 = vpop.f32.mrf.mxu0
    %v410 = vpop.f32.mrf.mxu0
    %v411 = vadd.f32 %v352, %v410
    %v412 = vpop.f32.mrf.mxu0
    %413 = vmatprep.mubr.bf16.mxu0 0
    %414 = vmatmul.mubr.bf16.gmra.mxu0 %v365
    %v415 = vpop.f32.mrf.mxu0
    %v416 = vadd.f32 %v352, %v415
    %v417 = vpop.f32.mrf.mxu0
    %v418 = vpop.f32.mrf.mxu0
    %v419 = vadd.f32 %v352, %v418
    %v420 = vpop.f32.mrf.mxu0
    %421 = vmatprep.mubr.bf16.mxu0 0
    %422 = vmatmul.mubr.bf16.gmra.mxu0 %v368
    %v423 = vpop.f32.mrf.mxu0
    %v424 = vadd.f32 %v352, %v423
    %v425 = vpop.f32.mrf.mxu0
    %v426 = vpop.f32.mrf.mxu0
    %v427 = vadd.f32 %v352, %v426
    %v428 = vpop.f32.mrf.mxu0
    %429 = vmatprep.mubr.bf16.mxu0 0
    %430 = vmatmul.mubr.bf16.gmra.mxu0 %v371
    %v431 = vpop.f32.mrf.mxu0
    %v432 = vadd.f32 %v352, %v431
    %v433 = vpop.f32.mrf.mxu0
    %v434 = vpop.f32.mrf.mxu0
    %v435 = vadd.f32 %v352, %v434
    %v436 = vpop.f32.mrf.mxu0
    %437 = vdwg.mxu0
    %v438 = vmax.f32 %v408, 0.0
    %v439 = vmax.f32 %v411, 0.0
    %v440 = vmax.f32 %v416, 0.0
    %v441 = vmax.f32 %v419, 0.0
    %v442 = vmax.f32 %v424, 0.0
    %v443 = vmax.f32 %v427, 0.0
    %v444 = vmax.f32 %v432, 0.0
    %v445 = vmax.f32 %v435, 0.0
    %v446 = vpack.c.bf16 %v439, %v438
    %v447 = vpack.c.bf16 %v441, %v440
    %v448 = vpack.c.bf16 %v443, %v442
    %v449 = vpack.c.bf16 %v445, %v444
    %v450 = vld [vmem:[%s5] sm:$0xf]
    %v451 = vld [vmem:[%s5 + $0x4] sm:$0xf]
    %v452 = vld [vmem:[%s5 + $0x8] sm:$0xf]
    %v453 = vld [vmem:[%s5 + $0xc] sm:$0xf]
    %v454 = vld [vmem:[#allocation8] sm:$0x1]
    %v456 = vlaneseq
    %v457 = vshrl.u32 %v456, 7
    %v458 = vsub.s32 0, %v457
    %v459 = vrot.slane %v454, %v458
    %v465 = vunpack.c.l.b16 %v450
    %v466 = vunpack.c.l.b16 %v451
    %v467 = vunpack.c.l.b16 %v452
    %v468 = vunpack.c.l.b16 %v453
    %v469 = vpack.c.b16 %v466, %v465
    %v470 = vpack.c.b16 %v468, %v467
    %vm473 = vcmask 261120
    %v475 = vsel %vm473, %v446, 0
    %v478 = vsel %vm473, %v447, 0
    %v481 = vsel %vm473, %v448, 0
    %v484 = vsel %vm473, %v449, 0
    %486 = vmatprep.subr.bf16.mxu0 0
    %487 = vmatpush1.bf16.msra.mxu0 0
    %488 = vmatprep.subr.bf16.mxu0 0
    %489 = vmatpush1.bf16.msra.mxu0 0
    %490 = vmatprep.subr.bf16.mxu0 0
    %491 = vmatpush1.bf16.msra.mxu0 0
    %492 = vmatprep.subr.bf16.mxu0 0
    %493 = vmatpush1.bf16.msra.mxu0 0
    %494 = vmatprep.subr.bf16.mxu0 0
    %495 = vmatpush1.bf16.msra.mxu0 0
    %496 = vmatprep.subr.bf16.mxu0 0
    %497 = vmatpush1.bf16.msra.mxu0 0
    %498 = vmatprep.subr.bf16.mxu0 0
    %499 = vmatpush1.bf16.msra.mxu0 %v470
    %500 = vmatprep.subr.bf16.mxu0 0
    %501 = vmatpush1.bf16.msra.mxu0 %v469
    %502 = vmatprep.subr.bf16.mxu0 0
    %503 = vmatpush2.bf16.msra.mxu0 0
    %504 = vmatprep.subr.bf16.mxu0 0
    %505 = vmatpush2.bf16.msra.mxu0 0
    %506 = vmatprep.subr.bf16.mxu0 0
    %507 = vmatpush2.bf16.msra.mxu0 0
    %508 = vmatprep.subr.bf16.mxu0 0
    %509 = vmatpush2.bf16.msra.mxu0 0
    %510 = vmatprep.subr.bf16.mxu0 0
    %511 = vmatpush2.bf16.msra.mxu0 0
    %512 = vmatprep.subr.bf16.mxu0 0
    %513 = vmatpush2.bf16.msra.mxu0 0
    %514 = vmatprep.subr.bf16.mxu0 0
    %515 = vmatpush2.bf16.msra.mxu0 0
    %516 = vmatprep.subr.bf16.mxu0 0
    %517 = vmatpush2.bf16.msra.mxu0 0
    %518 = vmatprep.mubr.bf16.mxu0 0
    %519 = vmatmul.mubr.bf16.gmra.mxu0 %v475
    %v520 = vpop.f32.mrf.mxu0
    %v521 = vadd.f32 %v459, %v520
    %v522 = vpop.f32.mrf.mxu0
    %v523 = vpop.f32.mrf.mxu0
    %v524 = vadd.f32 %v459, %v523
    %v525 = vpop.f32.mrf.mxu0
    %526 = vmatprep.mubr.bf16.mxu0 0
    %527 = vmatmul.mubr.bf16.gmra.mxu0 %v478
    %v528 = vpop.f32.mrf.mxu0
    %v529 = vadd.f32 %v459, %v528
    %v530 = vpop.f32.mrf.mxu0
    %v531 = vpop.f32.mrf.mxu0
    %v532 = vadd.f32 %v459, %v531
    %v533 = vpop.f32.mrf.mxu0
    %534 = vmatprep.mubr.bf16.mxu0 0
    %535 = vmatmul.mubr.bf16.gmra.mxu0 %v481
    %v536 = vpop.f32.mrf.mxu0
    %v537 = vadd.f32 %v459, %v536
    %v538 = vpop.f32.mrf.mxu0
    %v539 = vpop.f32.mrf.mxu0
    %v540 = vadd.f32 %v459, %v539
    %v541 = vpop.f32.mrf.mxu0
    %542 = vmatprep.mubr.bf16.mxu0 0
    %543 = vmatmul.mubr.bf16.gmra.mxu0 %v484
    %v544 = vpop.f32.mrf.mxu0
    %v545 = vadd.f32 %v459, %v544
    %v546 = vpop.f32.mrf.mxu0
    %v547 = vpop.f32.mrf.mxu0
    %v548 = vadd.f32 %v459, %v547
    %v549 = vpop.f32.mrf.mxu0
    %550 = vdwg.mxu0
    %v551 = vmax.f32 %v521, 0.0
    %v552 = vmax.f32 %v524, 0.0
    %v553 = vmax.f32 %v529, 0.0
    %v554 = vmax.f32 %v532, 0.0
    %v555 = vmax.f32 %v537, 0.0
    %v556 = vmax.f32 %v540, 0.0
    %v557 = vmax.f32 %v545, 0.0
    %v558 = vmax.f32 %v548, 0.0
    %v559 = vld [vmem:[#allocation10] sm:$0x1]
    %v561 = vlaneseq
    %v562 = vshrl.u32 %v561, 7
    %v563 = vsub.s32 0, %v562
    %v564 = vrot.slane %v559, %v563
    %v566 = vmul.f32 %v551, %v564
    %v567 = vmul.f32 %v552, %v564
    %v568 = vmul.f32 %v553, %v564
    %v569 = vmul.f32 %v554, %v564
    %v570 = vmul.f32 %v555, %v564
    %v571 = vmul.f32 %v556, %v564
    %v572 = vmul.f32 %v557, %v564
    %v573 = vmul.f32 %v558, %v564
    %v574 = vld [vmem:[#allocation11] sm:$0x1]
    %v576 = vlaneseq
    %v577 = vshrl.u32 %v576, 7
    %v578 = vsub.s32 0, %v577
    %v579 = vrot.slane %v574, %v578
    %v581 = vadd.f32 %v566, %v579
    %v582 = vadd.f32 %v567, %v579
    %v583 = vadd.f32 %v568, %v579
    %v584 = vadd.f32 %v569, %v579
    %v585 = vadd.f32 %v570, %v579
    %v586 = vadd.f32 %v571, %v579
    %v587 = vadd.f32 %v572, %v579
    %v588 = vadd.f32 %v573, %v579
    %v589 = vpack.c.bf16 %v582, %v581
    %v590 = vpack.c.bf16 %v584, %v583
    %v591 = vpack.c.bf16 %v586, %v585
    %v592 = vpack.c.bf16 %v588, %v587
    %593 = vmatprep.subr.bf16.mxu0 0
    %594 = vmatpush1.bf16.msra.mxu0 0
    %595 = vmatprep.subr.bf16.mxu0 0
    %596 = vmatpush1.bf16.msra.mxu0 0
    %597 = vmatprep.subr.bf16.mxu0 0
    %598 = vmatpush1.bf16.msra.mxu0 0
    %599 = vmatprep.subr.bf16.mxu0 0
    %600 = vmatpush1.bf16.msra.mxu0 0
    %601 = vmatprep.subr.bf16.mxu0 0
    %602 = vmatpush1.bf16.msra.mxu0 %v592
    %603 = vmatprep.subr.bf16.mxu0 0
    %604 = vmatpush1.bf16.msra.mxu0 %v591
    %605 = vmatprep.subr.bf16.mxu0 0
    %606 = vmatpush1.bf16.msra.mxu0 %v590
    %607 = vmatprep.subr.bf16.mxu0 0
    %608 = vmatpush1.bf16.msra.mxu0 %v589
    %609 = vmatprep.subr.bf16.mxu0 0
    %610 = vmatpush2.bf16.msra.mxu0 0
    %611 = vmatprep.subr.bf16.mxu0 0
    %612 = vmatpush2.bf16.msra.mxu0 0
    %613 = vmatprep.subr.bf16.mxu0 0
    %614 = vmatpush2.bf16.msra.mxu0 0
    %615 = vmatprep.subr.bf16.mxu0 0
    %616 = vmatpush2.bf16.msra.mxu0 0
    %617 = vmatprep.subr.bf16.mxu0 0
    %618 = vmatpush2.bf16.msra.mxu0 0
    %619 = vmatprep.subr.bf16.mxu0 0
    %620 = vmatpush2.bf16.msra.mxu0 0
    %621 = vmatprep.subr.bf16.mxu0 0
    %622 = vmatpush2.bf16.msra.mxu0 0
    %623 = vmatprep.subr.bf16.mxu0 0
    %624 = vmatpush2.bf16.msra.mxu0 0
    %625 = vmatprep.mubr.bf16.mxu0 0
    %626 = vmatmul.mubr.bf16.gmra.mxu0 %v265
    %v627 = vpop.f32.mrf.mxu0
    %v628 = vadd.f32 0.0, %v627
    %v629 = vpop.f32.mrf.mxu0
    %v630 = vpop.f32.mrf.mxu0
    %v631 = vadd.f32 0.0, %v630
    %v632 = vpop.f32.mrf.mxu0
    %633 = vmatprep.mubr.bf16.mxu0 0
    %634 = vmatmul.mubr.bf16.gmra.mxu0 %v268
    %v635 = vpop.f32.mrf.mxu0
    %v636 = vadd.f32 0.0, %v635
    %v637 = vpop.f32.mrf.mxu0
    %v638 = vpop.f32.mrf.mxu0
    %v639 = vadd.f32 0.0, %v638
    %v640 = vpop.f32.mrf.mxu0
    %641 = vmatprep.mubr.bf16.mxu0 0
    %642 = vmatmul.mubr.bf16.gmra.mxu0 %v271
    %v643 = vpop.f32.mrf.mxu0
    %v644 = vadd.f32 0.0, %v643
    %v645 = vpop.f32.mrf.mxu0
    %v646 = vpop.f32.mrf.mxu0
    %v647 = vadd.f32 0.0, %v646
    %v648 = vpop.f32.mrf.mxu0
    %649 = vmatprep.mubr.bf16.mxu0 0
    %650 = vmatmul.mubr.bf16.gmra.mxu0 %v274
    %v651 = vpop.f32.mrf.mxu0
    %v652 = vadd.f32 0.0, %v651
    %v653 = vpop.f32.mrf.mxu0
    %v654 = vpop.f32.mrf.mxu0
    %v655 = vadd.f32 0.0, %v654
    %v656 = vpop.f32.mrf.mxu0
    %657 = vdwg.mxu0
    %v658 = vpack.c.bf16 %v631, %v628
    %v659 = vpack.c.bf16 %v639, %v636
    %v660 = vpack.c.bf16 %v647, %v644
    %v661 = vpack.c.bf16 %v655, %v652
    %v662 = vld [vmem:[%s9] sm:$0xf]
    %v663 = vld [vmem:[%s9 + $0x4] sm:$0xf]
    %v664 = vld [vmem:[%s9 + $0x8] sm:$0xf]
    %v665 = vld [vmem:[%s9 + $0xc] sm:$0xf]
    %v666 = vld [vmem:[#allocation13] sm:$0x1]
    %v668 = vlaneseq
    %v669 = vshrl.u32 %v668, 7
    %v670 = vsub.s32 0, %v669
    %v671 = vrot.slane %v666, %v670
    %v677 = vunpack.c.l.b16 %v662
    %v678 = vunpack.c.l.b16 %v663
    %v679 = vunpack.c.l.b16 %v664
    %v680 = vunpack.c.l.b16 %v665
    %v681 = vpack.c.b16 %v678, %v677
    %v682 = vpack.c.b16 %v680, %v679
    %v686 = vsel %vm473, %v658, 0
    %v689 = vsel %vm473, %v659, 0
    %v692 = vsel %vm473, %v660, 0
    %v695 = vsel %vm473, %v661, 0
    %697 = vmatprep.subr.bf16.mxu0 0
    %698 = vmatpush1.bf16.msra.mxu0 0
    %699 = vmatprep.subr.bf16.mxu0 0
    %700 = vmatpush1.bf16.msra.mxu0 0
    %701 = vmatprep.subr.bf16.mxu0 0
    %702 = vmatpush1.bf16.msra.mxu0 0
    %703 = vmatprep.subr.bf16.mxu0 0
    %704 = vmatpush1.bf16.msra.mxu0 0
    %705 = vmatprep.subr.bf16.mxu0 0
    %706 = vmatpush1.bf16.msra.mxu0 0
    %707 = vmatprep.subr.bf16.mxu0 0
    %708 = vmatpush1.bf16.msra.mxu0 0
    %709 = vmatprep.subr.bf16.mxu0 0
    %710 = vmatpush1.bf16.msra.mxu0 %v682
    %711 = vmatprep.subr.bf16.mxu0 0
    %712 = vmatpush1.bf16.msra.mxu0 %v681
    %713 = vmatprep.subr.bf16.mxu0 0
    %714 = vmatpush2.bf16.msra.mxu0 0
    %715 = vmatprep.subr.bf16.mxu0 0
    %716 = vmatpush2.bf16.msra.mxu0 0
    %717 = vmatprep.subr.bf16.mxu0 0
    %718 = vmatpush2.bf16.msra.mxu0 0
    %719 = vmatprep.subr.bf16.mxu0 0
    %720 = vmatpush2.bf16.msra.mxu0 0
    %721 = vmatprep.subr.bf16.mxu0 0
    %722 = vmatpush2.bf16.msra.mxu0 0
    %723 = vmatprep.subr.bf16.mxu0 0
    %724 = vmatpush2.bf16.msra.mxu0 0
    %725 = vmatprep.subr.bf16.mxu0 0
    %726 = vmatpush2.bf16.msra.mxu0 0
    %727 = vmatprep.subr.bf16.mxu0 0
    %728 = vmatpush2.bf16.msra.mxu0 0
    %729 = vmatprep.mubr.bf16.mxu0 0
    %730 = vmatmul.mubr.bf16.gmra.mxu0 %v686
    %v731 = vpop.f32.mrf.mxu0
    %v732 = vadd.f32 %v671, %v731
    %v733 = vpop.f32.mrf.mxu0
    %v734 = vpop.f32.mrf.mxu0
    %v735 = vadd.f32 %v671, %v734
    %v736 = vpop.f32.mrf.mxu0
    %737 = vmatprep.mubr.bf16.mxu0 0
    %738 = vmatmul.mubr.bf16.gmra.mxu0 %v689
    %v739 = vpop.f32.mrf.mxu0
    %v740 = vadd.f32 %v671, %v739
    %v741 = vpop.f32.mrf.mxu0
    %v742 = vpop.f32.mrf.mxu0
    %v743 = vadd.f32 %v671, %v742
    %v744 = vpop.f32.mrf.mxu0
    %745 = vmatprep.mubr.bf16.mxu0 0
    %746 = vmatmul.mubr.bf16.gmra.mxu0 %v692
    %v747 = vpop.f32.mrf.mxu0
    %v748 = vadd.f32 %v671, %v747
    %v749 = vpop.f32.mrf.mxu0
    %v750 = vpop.f32.mrf.mxu0
    %v751 = vadd.f32 %v671, %v750
    %v752 = vpop.f32.mrf.mxu0
    %753 = vmatprep.mubr.bf16.mxu0 0
    %754 = vmatmul.mubr.bf16.gmra.mxu0 %v695
    %v755 = vpop.f32.mrf.mxu0
    %v756 = vadd.f32 %v671, %v755
    %v757 = vpop.f32.mrf.mxu0
    %v758 = vpop.f32.mrf.mxu0
    %v759 = vadd.f32 %v671, %v758
    %v760 = vpop.f32.mrf.mxu0
    %761 = vdwg.mxu0
    %v762 = vmax.f32 %v732, 0.0
    %v763 = vmax.f32 %v735, 0.0
    %v764 = vmax.f32 %v740, 0.0
    %v765 = vmax.f32 %v743, 0.0
    %v766 = vmax.f32 %v748, 0.0
    %v767 = vmax.f32 %v751, 0.0
    %v768 = vmax.f32 %v756, 0.0
    %v769 = vmax.f32 %v759, 0.0
    %v770 = vpack.c.bf16 %v763, %v762
    %v771 = vpack.c.bf16 %v765, %v764
    %v772 = vpack.c.bf16 %v767, %v766
    %v773 = vpack.c.bf16 %v769, %v768
    %v774 = vld [vmem:[%s11] sm:$0xf]
    %v775 = vld [vmem:[%s11 + $0x4] sm:$0xf]
    %v776 = vld [vmem:[%s11 + $0x8] sm:$0xf]
    %v777 = vld [vmem:[%s11 + $0xc] sm:$0xf]
    %v778 = vld [vmem:[%s12] sm:$0x1]
    %v780 = vlaneseq
    %v781 = vshrl.u32 %v780, 7
    %v782 = vsub.s32 0, %v781
    %v783 = vrot.slane %v778, %v782
    %v789 = vunpack.c.l.b16 %v774
    %v790 = vunpack.c.l.b16 %v775
    %v791 = vunpack.c.l.b16 %v776
    %v792 = vunpack.c.l.b16 %v777
    %v793 = vpack.c.b16 %v790, %v789
    %v794 = vpack.c.b16 %v792, %v791
    %v798 = vsel %vm473, %v770, 0
    %v801 = vsel %vm473, %v771, 0
    %v804 = vsel %vm473, %v772, 0
    %v807 = vsel %vm473, %v773, 0
    %809 = vmatprep.subr.bf16.mxu0 0
    %810 = vmatpush1.bf16.msra.mxu0 0
    %811 = vmatprep.subr.bf16.mxu0 0
    %812 = vmatpush1.bf16.msra.mxu0 0
    %813 = vmatprep.subr.bf16.mxu0 0
    %814 = vmatpush1.bf16.msra.mxu0 0
    %815 = vmatprep.subr.bf16.mxu0 0
    %816 = vmatpush1.bf16.msra.mxu0 0
    %817 = vmatprep.subr.bf16.mxu0 0
    %818 = vmatpush1.bf16.msra.mxu0 0
    %819 = vmatprep.subr.bf16.mxu0 0
    %820 = vmatpush1.bf16.msra.mxu0 0
    %821 = vmatprep.subr.bf16.mxu0 0
    %822 = vmatpush1.bf16.msra.mxu0 %v794
    %823 = vmatprep.subr.bf16.mxu0 0
    %824 = vmatpush1.bf16.msra.mxu0 %v793
    %825 = vmatprep.subr.bf16.mxu0 0
    %826 = vmatpush2.bf16.msra.mxu0 0
    %827 = vmatprep.subr.bf16.mxu0 0
    %828 = vmatpush2.bf16.msra.mxu0 0
    %829 = vmatprep.subr.bf16.mxu0 0
    %830 = vmatpush2.bf16.msra.mxu0 0
    %831 = vmatprep.subr.bf16.mxu0 0
    %832 = vmatpush2.bf16.msra.mxu0 0
    %833 = vmatprep.subr.bf16.mxu0 0
    %834 = vmatpush2.bf16.msra.mxu0 0
    %835 = vmatprep.subr.bf16.mxu0 0
    %836 = vmatpush2.bf16.msra.mxu0 0
    %837 = vmatprep.subr.bf16.mxu0 0
    %838 = vmatpush2.bf16.msra.mxu0 0
    %839 = vmatprep.subr.bf16.mxu0 0
    %840 = vmatpush2.bf16.msra.mxu0 0
    %841 = vmatprep.mubr.bf16.mxu0 0
    %842 = vmatmul.mubr.bf16.gmra.mxu0 %v798
    %v843 = vpop.f32.mrf.mxu0
    %v844 = vadd.f32 %v783, %v843
    %v845 = vpop.f32.mrf.mxu0
    %v846 = vpop.f32.mrf.mxu0
    %v847 = vadd.f32 %v783, %v846
    %v848 = vpop.f32.mrf.mxu0
    %849 = vmatprep.mubr.bf16.mxu0 0
    %850 = vmatmul.mubr.bf16.gmra.mxu0 %v801
    %v851 = vpop.f32.mrf.mxu0
    %v852 = vadd.f32 %v783, %v851
    %v853 = vpop.f32.mrf.mxu0
    %v854 = vpop.f32.mrf.mxu0
    %v855 = vadd.f32 %v783, %v854
    %v856 = vpop.f32.mrf.mxu0
    %857 = vmatprep.mubr.bf16.mxu0 0
    %858 = vmatmul.mubr.bf16.gmra.mxu0 %v804
    %v859 = vpop.f32.mrf.mxu0
    %v860 = vadd.f32 %v783, %v859
    %v861 = vpop.f32.mrf.mxu0
    %v862 = vpop.f32.mrf.mxu0
    %v863 = vadd.f32 %v783, %v862
    %v864 = vpop.f32.mrf.mxu0
    %865 = vmatprep.mubr.bf16.mxu0 0
    %866 = vmatmul.mubr.bf16.gmra.mxu0 %v807
    %v867 = vpop.f32.mrf.mxu0
    %v868 = vadd.f32 %v783, %v867
    %v869 = vpop.f32.mrf.mxu0
    %v870 = vpop.f32.mrf.mxu0
    %v871 = vadd.f32 %v783, %v870
    %v872 = vpop.f32.mrf.mxu0
    %873 = vdwg.mxu0
    %v874 = vmax.f32 %v844, 0.0
    %v875 = vmax.f32 %v847, 0.0
    %v876 = vmax.f32 %v852, 0.0
    %v877 = vmax.f32 %v855, 0.0
    %v878 = vmax.f32 %v860, 0.0
    %v879 = vmax.f32 %v863, 0.0
    %v880 = vmax.f32 %v868, 0.0
    %v881 = vmax.f32 %v871, 0.0
    %v882 = vld [vmem:[#allocation14] sm:$0x1]
    %v884 = vlaneseq
    %v885 = vshrl.u32 %v884, 7
    %v886 = vsub.s32 0, %v885
    %v887 = vrot.slane %v882, %v886
    %v889 = vmul.f32 %v874, %v887
    %v890 = vmul.f32 %v875, %v887
    %v891 = vmul.f32 %v876, %v887
    %v892 = vmul.f32 %v877, %v887
    %v893 = vmul.f32 %v878, %v887
    %v894 = vmul.f32 %v879, %v887
    %v895 = vmul.f32 %v880, %v887
    %v896 = vmul.f32 %v881, %v887
    %v897 = vld [vmem:[#allocation16] sm:$0x1]
    %v899 = vlaneseq
    %v900 = vshrl.u32 %v899, 7
    %v901 = vsub.s32 0, %v900
    %v902 = vrot.slane %v897, %v901
    %v904 = vadd.f32 %v889, %v902
    %v905 = vadd.f32 %v890, %v902
    %v906 = vadd.f32 %v891, %v902
    %v907 = vadd.f32 %v892, %v902
    %v908 = vadd.f32 %v893, %v902
    %v909 = vadd.f32 %v894, %v902
    %v910 = vadd.f32 %v895, %v902
    %v911 = vadd.f32 %v896, %v902
    %v912 = vpack.c.bf16 %v905, %v904
    %v913 = vpack.c.bf16 %v907, %v906
    %v914 = vpack.c.bf16 %v909, %v908
    %v915 = vpack.c.bf16 %v911, %v910
    %v916 = vld [vmem:[#allocation17] sm:$0xf]
    %v917 = vld [vmem:[#allocation17 + $0x4] sm:$0xf]
    %v918 = vld [vmem:[#allocation17 + $0x8] sm:$0xf]
    %v919 = vld [vmem:[#allocation17 + $0xc] sm:$0xf]
    %v920 = vld [vmem:[%s16] sm:$0x1]
    %v922 = vlaneseq
    %v923 = vshrl.u32 %v922, 7
    %v924 = vsub.s32 0, %v923
    %v925 = vrot.slane %v920, %v924
    %v931 = vunpack.c.l.b16 %v916
    %v932 = vunpack.c.l.b16 %v917
    %v933 = vunpack.c.l.b16 %v918
    %v934 = vunpack.c.l.b16 %v919
    %v935 = vpack.c.b16 %v932, %v931
    %v936 = vpack.c.b16 %v934, %v933
    %v940 = vsel %vm473, %v912, 0
    %v943 = vsel %vm473, %v913, 0
    %v946 = vsel %vm473, %v914, 0
    %v949 = vsel %vm473, %v915, 0
    %951 = vmatprep.subr.bf16.mxu0 0
    %952 = vmatpush1.bf16.msra.mxu0 0
    %953 = vmatprep.subr.bf16.mxu0 0
    %954 = vmatpush1.bf16.msra.mxu0 0
    %955 = vmatprep.subr.bf16.mxu0 0
    %956 = vmatpush1.bf16.msra.mxu0 0
    %957 = vmatprep.subr.bf16.mxu0 0
    %958 = vmatpush1.bf16.msra.mxu0 0
    %959 = vmatprep.subr.bf16.mxu0 0
    %960 = vmatpush1.bf16.msra.mxu0 0
    %961 = vmatprep.subr.bf16.mxu0 0
    %962 = vmatpush1.bf16.msra.mxu0 0
    %963 = vmatprep.subr.bf16.mxu0 0
    %964 = vmatpush1.bf16.msra.mxu0 %v936
    %965 = vmatprep.subr.bf16.mxu0 0
    %966 = vmatpush1.bf16.msra.mxu0 %v935
    %967 = vmatprep.subr.bf16.mxu0 0
    %968 = vmatpush2.bf16.msra.mxu0 0
    %969 = vmatprep.subr.bf16.mxu0 0
    %970 = vmatpush2.bf16.msra.mxu0 0
    %971 = vmatprep.subr.bf16.mxu0 0
    %972 = vmatpush2.bf16.msra.mxu0 0
    %973 = vmatprep.subr.bf16.mxu0 0
    %974 = vmatpush2.bf16.msra.mxu0 0
    %975 = vmatprep.subr.bf16.mxu0 0
    %976 = vmatpush2.bf16.msra.mxu0 0
    %977 = vmatprep.subr.bf16.mxu0 0
    %978 = vmatpush2.bf16.msra.mxu0 0
    %979 = vmatprep.subr.bf16.mxu0 0
    %980 = vmatpush2.bf16.msra.mxu0 0
    %981 = vmatprep.subr.bf16.mxu0 0
    %982 = vmatpush2.bf16.msra.mxu0 0
    %983 = vmatprep.mubr.bf16.mxu0 0
    %984 = vmatmul.mubr.bf16.gmra.mxu0 %v940
    %v985 = vpop.f32.mrf.mxu0
    %v986 = vadd.f32 %v925, %v985
    %v987 = vpop.f32.mrf.mxu0
    %v988 = vpop.f32.mrf.mxu0
    %v989 = vadd.f32 %v925, %v988
    %v990 = vpop.f32.mrf.mxu0
    %991 = vmatprep.mubr.bf16.mxu0 0
    %992 = vmatmul.mubr.bf16.gmra.mxu0 %v943
    %v993 = vpop.f32.mrf.mxu0
    %v994 = vadd.f32 %v925, %v993
    %v995 = vpop.f32.mrf.mxu0
    %v996 = vpop.f32.mrf.mxu0
    %v997 = vadd.f32 %v925, %v996
    %v998 = vpop.f32.mrf.mxu0
    %999 = vmatprep.mubr.bf16.mxu0 0
    %1000 = vmatmul.mubr.bf16.gmra.mxu0 %v946
    %v1001 = vpop.f32.mrf.mxu0
    %v1002 = vadd.f32 %v925, %v1001
    %v1003 = vpop.f32.mrf.mxu0
    %v1004 = vpop.f32.mrf.mxu0
    %v1005 = vadd.f32 %v925, %v1004
    %v1006 = vpop.f32.mrf.mxu0
    %1007 = vmatprep.mubr.bf16.mxu0 0
    %1008 = vmatmul.mubr.bf16.gmra.mxu0 %v949
    %v1009 = vpop.f32.mrf.mxu0
    %v1010 = vadd.f32 %v925, %v1009
    %v1011 = vpop.f32.mrf.mxu0
    %v1012 = vpop.f32.mrf.mxu0
    %v1013 = vadd.f32 %v925, %v1012
    %v1014 = vpop.f32.mrf.mxu0
    %1015 = vdwg.mxu0
    %v1016 = vmax.f32 %v986, 0.0
    %v1017 = vmax.f32 %v989, 0.0
    %v1018 = vmax.f32 %v994, 0.0
    %v1019 = vmax.f32 %v997, 0.0
    %v1020 = vmax.f32 %v1002, 0.0
    %v1021 = vmax.f32 %v1005, 0.0
    %v1022 = vmax.f32 %v1010, 0.0
    %v1023 = vmax.f32 %v1013, 0.0
    %v1024 = vld [vmem:[#allocation2] sm:$0x3]
    %v1025 = vpack.c.bf16 %v1017, %v1016
    %v1026 = vpack.c.bf16 %v1019, %v1018
    %v1027 = vpack.c.bf16 %v1021, %v1020
    %v1028 = vpack.c.bf16 %v1023, %v1022
    %v1030 = vsel %vm263, %v1024, 0
    %1032 = vmatprep.subr.bf16.mxu0 0
    %1033 = vmatpush1.bf16.msra.mxu0 0
    %1034 = vmatprep.subr.bf16.mxu0 0
    %1035 = vmatpush1.bf16.msra.mxu0 0
    %1036 = vmatprep.subr.bf16.mxu0 0
    %1037 = vmatpush1.bf16.msra.mxu0 0
    %1038 = vmatprep.subr.bf16.mxu0 0
    %1039 = vmatpush1.bf16.msra.mxu0 0
    %1040 = vmatprep.subr.bf16.mxu0 0
    %1041 = vmatpush1.bf16.msra.mxu0 %v1028
    %1042 = vmatprep.subr.bf16.mxu0 0
    %1043 = vmatpush1.bf16.msra.mxu0 %v1027
    %1044 = vmatprep.subr.bf16.mxu0 0
    %1045 = vmatpush1.bf16.msra.mxu0 %v1026
    %1046 = vmatprep.subr.bf16.mxu0 0
    %1047 = vmatpush1.bf16.msra.mxu0 %v1025
    %1048 = vmatprep.subr.bf16.mxu0 0
    %1049 = vmatpush2.bf16.msra.mxu0 0
    %1050 = vmatprep.subr.bf16.mxu0 0
    %1051 = vmatpush2.bf16.msra.mxu0 0
    %1052 = vmatprep.subr.bf16.mxu0 0
    %1053 = vmatpush2.bf16.msra.mxu0 0
    %1054 = vmatprep.subr.bf16.mxu0 0
    %1055 = vmatpush2.bf16.msra.mxu0 0
    %1056 = vmatprep.subr.bf16.mxu0 0
    %1057 = vmatpush2.bf16.msra.mxu0 0
    %1058 = vmatprep.subr.bf16.mxu0 0
    %1059 = vmatpush2.bf16.msra.mxu0 0
    %1060 = vmatprep.subr.bf16.mxu0 0
    %1061 = vmatpush2.bf16.msra.mxu0 0
    %1062 = vmatprep.subr.bf16.mxu0 0
    %1063 = vmatpush2.bf16.msra.mxu0 0
    %1064 = vmatprep.mubr.bf16.mxu0 0
    %1065 = vmatmul.mubr.bf16.gmra.mxu0 %v1030
    %v1066 = vpop.f32.mrf.mxu0
    %v1067 = vadd.f32 0.0, %v1066
    %v1068 = vpop.f32.mrf.mxu0
    %v1069 = vpop.f32.mrf.mxu0
    %v1070 = vpop.f32.mrf.mxu0
    %1071 = vdwg.mxu0
    %v1072 = vpack.c.bf16 %v1067, %v1067
    %v1073 = vld [vmem:[#allocation19] sm:$0xf]
    %v1074 = vld [vmem:[#allocation19 + $0x4] sm:$0xf]
    %v1075 = vld [vmem:[#allocation19 + $0x8] sm:$0xf]
    %v1076 = vld [vmem:[#allocation19 + $0xc] sm:$0xf]
    %v1077 = vld [vmem:[%s18] sm:$0x1]
    %v1079 = vlaneseq
    %v1080 = vshrl.u32 %v1079, 7
    %v1081 = vsub.s32 0, %v1080
    %v1082 = vrot.slane %v1077, %v1081
    %v1088 = vunpack.c.l.b16 %v1073
    %v1089 = vunpack.c.l.b16 %v1074
    %v1090 = vunpack.c.l.b16 %v1075
    %v1091 = vunpack.c.l.b16 %v1076
    %v1092 = vpack.c.b16 %v1089, %v1088
    %v1093 = vpack.c.b16 %v1091, %v1090
    %v1097 = vsel %vm473, %v1072, 0
    %1099 = vmatprep.subr.bf16.mxu0 0
    %1100 = vmatpush1.bf16.msra.mxu0 0
    %1101 = vmatprep.subr.bf16.mxu0 0
    %1102 = vmatpush1.bf16.msra.mxu0 0
    %1103 = vmatprep.subr.bf16.mxu0 0
    %1104 = vmatpush1.bf16.msra.mxu0 0
    %1105 = vmatprep.subr.bf16.mxu0 0
    %1106 = vmatpush1.bf16.msra.mxu0 0
    %1107 = vmatprep.subr.bf16.mxu0 0
    %1108 = vmatpush1.bf16.msra.mxu0 0
    %1109 = vmatprep.subr.bf16.mxu0 0
    %1110 = vmatpush1.bf16.msra.mxu0 0
    %1111 = vmatprep.subr.bf16.mxu0 0
    %1112 = vmatpush1.bf16.msra.mxu0 %v1093
    %1113 = vmatprep.subr.bf16.mxu0 0
    %1114 = vmatpush1.bf16.msra.mxu0 %v1092
    %1115 = vmatprep.subr.bf16.mxu0 0
    %1116 = vmatpush2.bf16.msra.mxu0 0
    %1117 = vmatprep.subr.bf16.mxu0 0
    %1118 = vmatpush2.bf16.msra.mxu0 0
    %1119 = vmatprep.subr.bf16.mxu0 0
    %1120 = vmatpush2.bf16.msra.mxu0 0
    %1121 = vmatprep.subr.bf16.mxu0 0
    %1122 = vmatpush2.bf16.msra.mxu0 0
    %1123 = vmatprep.subr.bf16.mxu0 0
    %1124 = vmatpush2.bf16.msra.mxu0 0
    %1125 = vmatprep.subr.bf16.mxu0 0
    %1126 = vmatpush2.bf16.msra.mxu0 0
    %1127 = vmatprep.subr.bf16.mxu0 0
    %1128 = vmatpush2.bf16.msra.mxu0 0
    %1129 = vmatprep.subr.bf16.mxu0 0
    %1130 = vmatpush2.bf16.msra.mxu0 0
    %1131 = vmatprep.mubr.bf16.mxu0 0
    %1132 = vmatmul.mubr.bf16.gmra.mxu0 %v1097
    %v1133 = vpop.f32.mrf.mxu0
    %v1134 = vadd.f32 %v1082, %v1133
    %v1135 = vpop.f32.mrf.mxu0
    %v1136 = vpop.f32.mrf.mxu0
    %v1137 = vpop.f32.mrf.mxu0
    %1138 = vdwg.mxu0
    %v1139 = vpack.c.bf16 %v1134, %v1134
    %v1140 = vld [vmem:[%s19] sm:$0xf]
    %v1141 = vld [vmem:[%s19 + $0x4] sm:$0xf]
    %v1142 = vld [vmem:[%s19 + $0x8] sm:$0xf]
    %v1143 = vld [vmem:[%s19 + $0xc] sm:$0xf]
    %v1144 = vld [vmem:[%s20] sm:$0x1]
    %v1146 = vlaneseq
    %v1147 = vshrl.u32 %v1146, 7
    %v1148 = vsub.s32 0, %v1147
    %v1149 = vrot.slane %v1144, %v1148
    %v1155 = vunpack.c.l.b16 %v1140
    %v1156 = vunpack.c.l.b16 %v1141
    %v1157 = vunpack.c.l.b16 %v1142
    %v1158 = vunpack.c.l.b16 %v1143
    %v1159 = vpack.c.b16 %v1156, %v1155
    %v1160 = vpack.c.b16 %v1158, %v1157
    %v1164 = vsel %vm473, %v1139, 0
    %1166 = vmatprep.subr.bf16.mxu0 0
    %1167 = vmatpush1.bf16.msra.mxu0 0
    %1168 = vmatprep.subr.bf16.mxu0 0
    %1169 = vmatpush1.bf16.msra.mxu0 0
    %1170 = vmatprep.subr.bf16.mxu0 0
    %1171 = vmatpush1.bf16.msra.mxu0 0
    %1172 = vmatprep.subr.bf16.mxu0 0
    %1173 = vmatpush1.bf16.msra.mxu0 0
    %1174 = vmatprep.subr.bf16.mxu0 0
    %1175 = vmatpush1.bf16.msra.mxu0 0
    %1176 = vmatprep.subr.bf16.mxu0 0
    %1177 = vmatpush1.bf16.msra.mxu0 0
    %1178 = vmatprep.subr.bf16.mxu0 0
    %1179 = vmatpush1.bf16.msra.mxu0 %v1160
    %1180 = vmatprep.subr.bf16.mxu0 0
    %1181 = vmatpush1.bf16.msra.mxu0 %v1159
    %1182 = vmatprep.subr.bf16.mxu0 0
    %1183 = vmatpush2.bf16.msra.mxu0 0
    %1184 = vmatprep.subr.bf16.mxu0 0
    %1185 = vmatpush2.bf16.msra.mxu0 0
    %1186 = vmatprep.subr.bf16.mxu0 0
    %1187 = vmatpush2.bf16.msra.mxu0 0
    %1188 = vmatprep.subr.bf16.mxu0 0
    %1189 = vmatpush2.bf16.msra.mxu0 0
    %1190 = vmatprep.subr.bf16.mxu0 0
    %1191 = vmatpush2.bf16.msra.mxu0 0
    %1192 = vmatprep.subr.bf16.mxu0 0
    %1193 = vmatpush2.bf16.msra.mxu0 0
    %1194 = vmatprep.subr.bf16.mxu0 0
    %1195 = vmatpush2.bf16.msra.mxu0 0
    %1196 = vmatprep.subr.bf16.mxu0 0
    %1197 = vmatpush2.bf16.msra.mxu0 0
    %1198 = vmatprep.mubr.bf16.mxu0 0
    %1199 = vmatmul.mubr.bf16.gmra.mxu0 %v1164
    %v1200 = vpop.f32.mrf.mxu0
    %v1201 = vadd.f32 %v1149, %v1200
    %v1202 = vpop.f32.mrf.mxu0
    %v1203 = vpop.f32.mrf.mxu0
    %v1204 = vpop.f32.mrf.mxu0
    %1205 = vdwg.mxu0
    %vm1206 = vcmask 60416
    %1207 = vst.msk [vmem:[#allocation20] sm:$0xf] %vm1206, %v1201
    // Predicated region
    $region130: #{tpu_custom_call.1} parent=1 // pred_check
      _
    $region131: #{tpu_custom_call.1} parent=1 // pred_check_branch
      %1209 = sbr.rel (0) target = $region133
    $region132: #{tpu_custom_call.1} parent=1 // pred_region
      %s1211 = ssub.s32 64, 64
      %1212 = vsyncadd [#allocation4], %s1211
      %s1214 = sshll.u32 [#allocation20], 4
      %s1215 = int_to_ptr.vmem [resolvable:$true] %s1214
      %1217 = dma.vmem_to_hbm [thread:$0]  %s1215, 64, %s21, [#allocation4]
    $region133: #{tpu_custom_call.1} parent=1 // pred_fallthru
      _
    // Predicated region
    $region134: #{tpu_custom_call.1} parent=1 // pred_check
      _
    $region135: #{tpu_custom_call.1} parent=1 // pred_check_branch
      %1219 = sbr.rel (0) target = $region137
    $region136: #{tpu_custom_call.1} parent=1 // pred_region
      %1220 = dma.done [#allocation4], 64
    $region137: #{tpu_custom_call.1} parent=1 // pred_fallthru
      _
    %1221 = vsyncpa [#allocation3], 1
    %1222 = vsyncpa [#allocation6], 1
    %1223 = vsyncpa [#allocation9], 1
    %1224 = vsyncpa [#allocation12], 1
    %1225 = vsyncpa [#allocation15], 1
    %1226 = vsyncpa [#allocation18], 1
    %1227 = vsyncpa [#allocation4], 1

</llo_original>
